<compile_context>
chip_gen: v5e
topology: v5e:2x2
jax: 0.10.0
libtpu: 0.0.40
codegen_flags: <defaults>
</compile_context>

<pallas_src>
import math

import numpy as np
import jax
import jax.numpy as jnp
from jax.experimental import pallas as pl
from jax.experimental.pallas import tpu as pltpu

# ----------------------------- model hyperparams -----------------------------
INPUT_SIZE = 16       # input feature size
EMBED      = 32       # embed_size
HEADS      = 2        # attention_heads[0]
HEAD_DIM   = EMBED // HEADS
HIDDEN     = 32       # hidden_layers[0]
N_OUTCOMES = 3        # len(Const.outcomes)  (synthetic choice)
SEQ        = 8        # L
BATCH      = 2        # N

NORM_EPS   = 0.01     # SimulatorBase eps
LN_EPS     = 1e-5     # torch.nn.LayerNorm default
MASK_NEG   = -1e30    # additive mask for cross-batch attention entries

BIAS_W     = max(128, 3 * EMBED)          # lane width of the packed bias slab
WMISC_W    = 2 * EMBED + HIDDEN + N_OUTCOMES


# ------------------------- one-time parameter packing -------------------------
def pack_params(params):
    """Host-side, run ONCE (outside jit): fold norm + scale, pack slabs."""
    F, E, Dh, HID, O = INPUT_SIZE, EMBED, HEAD_DIM, HIDDEN, N_OUTCOMES
    scale = 1.0 / math.sqrt(Dh)

    g = lambda k: np.asarray(params[k], np.float32)

    # Fold normalize((x - mean + eps)/(std + eps)) into the resize layer:
    #   x_norm = x*a + c  with  a = 1/(std+eps), c = (eps-mean)*a
    mean, std = g("input_mean"), g("input_std")
    a = np.broadcast_to(1.0 / (std + NORM_EPS), (F,))
    c = np.broadcast_to((NORM_EPS - mean) / (std + NORM_EPS), (F,))
    w_resize = g("w_resize")
    w_r = w_resize * a[:, None]                              # (F, E)
    b_r = g("b_resize").reshape(1, E) + c @ w_resize         # (1, E)

    # Fused QKV (1/sqrt(Dh) folded into the Q part).
    w_qkv = np.concatenate([g("w_q") * scale, g("w_k"), g("w_v")], axis=1)  # (E, 3E)
    b_qkv = np.concatenate([g("b_q").reshape(1, E) * scale,
                            g("b_k").reshape(1, E),
                            g("b_v").reshape(1, E)], axis=1)                # (1, 3E)

    # Misc weight slab: [w_resize(pad rows) | w_o | w_l | w_out] along lanes.
    w_misc = np.zeros((E, WMISC_W), np.float32)
    w_misc[:F, 0:E]                    = w_r
    w_misc[:,  E:2 * E]                = g("w_o")
    w_misc[:,  2 * E:2 * E + HID]      = g("w_l")
    w_misc[:HID, 2 * E + HID:WMISC_W]  = g("w_out")

    # Packed bias / vector slab, one row per vector.
    bias = np.zeros((8, BIAS_W), np.float32)
    bias[0, :E]      = b_r
    bias[1, :3 * E]  = b_qkv
    bias[2, :E]      = g("b_o").reshape(E)
    bias[3, :E]      = g("ln_g").reshape(E)
    bias[4, :E]      = g("ln_b").reshape(E)
    bias[5, :HID]    = g("b_l").reshape(HID)
    bias[6, :O]      = g("b_out").reshape(O)

    return {"w_qkv": jnp.asarray(w_qkv),
            "w_misc": jnp.asarray(w_misc),
            "bias": jnp.asarray(bias)}


# -------------------------------- wrapper --------------------------------------
def endpoint_attention_forward(x_lnf, packed):
    """x_lnf: (L, N, INPUT_SIZE) seq-first (PyTorch MHA convention).
    packed: output of pack_params() (prepared once, outside jit)."""
    L, N, F = x_lnf.shape
    R = L * N
    E, Dh, HID, O = EMBED, HEAD_DIM, HIDDEN, N_OUTCOMES

    def kernel(x_ref, wqkv_ref, wmisc_ref, bias_ref, o_ref):
        x = x_ref[...]                                   # (R, F)
        wm = wmisc_ref[...]                              # (E, WMISC_W)
        bb = bias_ref[...]                               # (8, BIAS_W)

        w_r   = wm[0:F,   0:E]
        w_o   = wm[:,     E:2 * E]
        w_l   = wm[:,     2 * E:2 * E + HID]
        w_out = wm[0:HID, 2 * E + HID:2 * E + HID + O]

        b_r   = bb[0:1, 0:E]
        b_qkv = bb[1:2, 0:3 * E]
        b_o   = bb[2:3, 0:E]
        ln_g  = bb[3:4, 0:E]
        ln_b  = bb[4:5, 0:E]
        b_l   = bb[5:6, 0:HID]
        b_out = bb[6:7, 0:O]

        # resize_layer (+ folded input normalization) + ReLU
        h = jnp.dot(x, w_r, preferred_element_type=jnp.float32) + b_r
        h = jnp.maximum(h, 0.0)                          # (R, E)

        # fused QKV projection: single MXU pass
        qkv = jnp.dot(h, wqkv_ref[...], preferred_element_type=jnp.float32) + b_qkv

        # block-diagonal mask over the folded batch (row r -> batch r % N)
        rows = jax.lax.broadcasted_iota(jnp.int32, (R, R), 0)
        cols = jax.lax.broadcasted_iota(jnp.int32, (R, R), 1)
        same = (rows % N) == (cols % N)

        attn = jnp.zeros((R, E), jnp.float32)
        for hh in range(HEADS):                          # static unrolled
            lo = hh * Dh
            q = qkv[:, lo:lo + Dh]                       # scale already folded
            k = qkv[:, E + lo:E + lo + Dh]
            v = qkv[:, 2 * E + lo:2 * E + lo + Dh]

            # scores: contract last dims (q @ k^T) directly on the MXU
            s = jax.lax.dot_general(q, k, (((1,), (1,)), ((), ())),
                                    preferred_element_type=jnp.float32)
            s = jnp.where(same, s, MASK_NEG)
            s = s - jnp.max(s, axis=-1, keepdims=True)
            p = jnp.exp(s)
            p = p * pl.reciprocal(jnp.sum(p, axis=-1, keepdims=True), approx=True)

            oh = jnp.dot(p, v, preferred_element_type=jnp.float32)       # (R, Dh)
            attn = attn + jnp.dot(oh, w_o[lo:lo + Dh, :],
                                  preferred_element_type=jnp.float32)    # (R, E)

        # residual + out-proj bias + LayerNorm + ReLU
        y = attn + b_o + h
        mu = jnp.mean(y, axis=-1, keepdims=True)
        var = jnp.mean((y - mu) ** 2, axis=-1, keepdims=True)
        y = (y - mu) * jax.lax.rsqrt(var + LN_EPS) * ln_g + ln_b
        y = jnp.maximum(y, 0.0)

        # layer (Linear E -> HIDDEN) + ReLU
        z = jnp.dot(y, w_l, preferred_element_type=jnp.float32) + b_l
        z = jnp.maximum(z, 0.0)

        # dropout -> identity (eval); outcome_layer + sigmoid
        out = jnp.dot(z, w_out, preferred_element_type=jnp.float32) + b_out
        o_ref[...] = jax.nn.sigmoid(out).astype(o_ref.dtype)

    # Fold batch into rows: (L, N, F) -> (R, F) is a free contiguous reshape.
    x2d = x_lnf.reshape(R, F).astype(jnp.float32)

    flops = 2 * R * (F * E + E * 3 * E
                     + HEADS * (2 * R * Dh + Dh * E)
                     + E * HID + HID * O)
    transcendentals = HEADS * R * R + R * (O + 1)
    bytes_accessed = 4 * (R * F + E * 3 * E + E * WMISC_W + 8 * BIAS_W + R * O)

    vmem_spec = pl.BlockSpec(memory_space=pltpu.MemorySpace.VMEM)
    out = pl.pallas_call(
        kernel,
        out_shape=jax.ShapeDtypeStruct((R, O), jnp.float32),
        in_specs=[vmem_spec, vmem_spec, vmem_spec, vmem_spec],
        out_specs=vmem_spec,
        cost_estimate=pl.CostEstimate(flops=flops,
                                      transcendentals=transcendentals,
                                      bytes_accessed=bytes_accessed),
    )(x2d, packed["w_qkv"], packed["w_misc"], packed["bias"])

    return out.reshape(L, N, O)                           # free reshape back


# --------------------------- reference (pure JAX) ------------------------------
def reference_forward(x_lnf, p):
    mean = jnp.asarray(p["input_mean"], jnp.float32)
    std = jnp.asarray(p["input_std"], jnp.float32)
    x = (x_lnf - mean + NORM_EPS) / (std + NORM_EPS)
    h = jnp.maximum(x @ p["w_resize"] + p["b_resize"], 0.0)           # (L, N, E)
    q = h @ p["w_q"] + p["b_q"]
    k = h @ p["w_k"] + p["b_k"]
    v = h @ p["w_v"] + p["b_v"]
    L, N, _ = h.shape

    def split(t):  # (L, N, E) -> (N, H, L, Dh)
        return jnp.transpose(t.reshape(L, N, HEADS, HEAD_DIM), (1, 2, 0, 3))

    qh, kh, vh = split(q) / math.sqrt(HEAD_DIM), split(k), split(v)
    s = jnp.einsum("nhld,nhmd->nhlm", qh, kh)
    pattn = jax.nn.softmax(s, axis=-1)
    ao = jnp.einsum("nhlm,nhmd->nhld", pattn, vh)                      # (N, H, L, Dh)
    ao = jnp.transpose(ao, (2, 0, 1, 3)).reshape(L, N, EMBED)
    attn = ao @ p["w_o"] + p["b_o"]

    y = attn + h
    mu = y.mean(-1, keepdims=True)
    var = ((y - mu) ** 2).mean(-1, keepdims=True)
    y = (y - mu) / jnp.sqrt(var + LN_EPS) * p["ln_g"] + p["ln_b"]
    y = jnp.maximum(y, 0.0)
    z = jnp.maximum(y @ p["w_l"] + p["b_l"], 0.0)
    out = z @ p["w_out"] + p["b_out"]
    return jax.nn.sigmoid(out)


# ----------------------------------- main --------------------------------------
def _init_params(key):
    ks = jax.random.split(key, 16)
    u = lambda k, shape, s: jax.random.uniform(k, shape, jnp.float32, -s, s)
    params = {
        "input_mean": jnp.zeros((1,), jnp.float32),   # register_buffer('input_mean', tensor([0]))
        "input_std": jnp.ones((1,), jnp.float32),     # register_buffer('input_std', tensor([1]))
        "w_resize": u(ks[0], (INPUT_SIZE, EMBED), 1.0 / math.sqrt(INPUT_SIZE)),
        "b_resize": u(ks[1], (1, EMBED), 1.0 / math.sqrt(INPUT_SIZE)),
        "w_q": u(ks[2], (EMBED, EMBED), 1.0 / math.sqrt(EMBED)),
        "b_q": u(ks[3], (1, EMBED), 1.0 / math.sqrt(EMBED)),
        "w_k": u(ks[4], (EMBED, EMBED), 1.0 / math.sqrt(EMBED)),
        "b_k": u(ks[5], (1, EMBED), 1.0 / math.sqrt(EMBED)),
        "w_v": u(ks[6], (EMBED, EMBED), 1.0 / math.sqrt(EMBED)),
        "b_v": u(ks[7], (1, EMBED), 1.0 / math.sqrt(EMBED)),
        "w_o": u(ks[8], (EMBED, EMBED), 1.0 / math.sqrt(EMBED)),
        "b_o": u(ks[9], (1, EMBED), 1.0 / math.sqrt(EMBED)),
        "ln_g": jnp.ones((1, EMBED), jnp.float32),
        "ln_b": jnp.zeros((1, EMBED), jnp.float32),
        "w_l": u(ks[10], (EMBED, HIDDEN), 1.0 / math.sqrt(EMBED)),
        "b_l": u(ks[11], (1, HIDDEN), 1.0 / math.sqrt(EMBED)),
        "w_out": u(ks[12], (HIDDEN, N_OUTCOMES), 1.0 / math.sqrt(HIDDEN)),
        "b_out": u(ks[13], (1, N_OUTCOMES), 1.0 / math.sqrt(HIDDEN)),
    }
    return params


if __name__ == "__main__":
    key = jax.random.PRNGKey(0)
    k_x, k_w = jax.random.split(key)
    x = jax.random.normal(k_x, (SEQ, BATCH, INPUT_SIZE), jnp.float32)
    params = _init_params(k_w)

    packed = pack_params(params)                 # one-time, outside the jit path

    fwd = jax.jit(endpoint_attention_forward)
    out = fwd(x, packed)
    out = jax.block_until_ready(out)

    ref = reference_forward(x, params)
    assert out.shape == (SEQ, BATCH, N_OUTCOMES)
    assert jnp.max(jnp.abs(out - ref)) < 1e-2, "mismatch vs pure-JAX reference"

    print("KERNEL_OK")
</pallas_src>

<mosaic_0001>
module attributes {stable_mosaic.version = 11 : i64} {
  func.func @kernel(%arg0: memref<16x16xf32, #tpu.memory_space<vmem>>, %arg1: memref<32x96xf32, #tpu.memory_space<vmem>>, %arg2: memref<32x99xf32, #tpu.memory_space<vmem>>, %arg3: memref<8x128xf32, #tpu.memory_space<vmem>>, %arg4: memref<16x3xf32, #tpu.memory_space<vmem>>) attributes {dimension_semantics = [], scalar_prefetch = 0 : i64, scratch_operands = 0 : i64, tpu.core_type = #tpu.core_type<tc>} {
    %c0 = arith.constant 0 : index
    %c0_0 = arith.constant 0 : index
    %0 = vector.load %arg0[%c0, %c0_0] : memref<16x16xf32, #tpu.memory_space<vmem>>, vector<16x16xf32>
    %c0_1 = arith.constant 0 : index
    %c0_2 = arith.constant 0 : index
    %1 = vector.load %arg2[%c0_1, %c0_2] : memref<32x99xf32, #tpu.memory_space<vmem>>, vector<32x99xf32>
    %c0_3 = arith.constant 0 : index
    %c0_4 = arith.constant 0 : index
    %2 = vector.load %arg3[%c0_3, %c0_4] : memref<8x128xf32, #tpu.memory_space<vmem>>, vector<8x128xf32>
    %3 = vector.extract_strided_slice %1 {offsets = [0, 0], sizes = [16, 32], strides = [1, 1]} : vector<32x99xf32> to vector<16x32xf32>
    %4 = vector.extract_strided_slice %1 {offsets = [0, 32], sizes = [32, 32], strides = [1, 1]} : vector<32x99xf32> to vector<32x32xf32>
    %5 = vector.extract_strided_slice %1 {offsets = [0, 64], sizes = [32, 32], strides = [1, 1]} : vector<32x99xf32> to vector<32x32xf32>
    %6 = vector.extract_strided_slice %1 {offsets = [0, 96], sizes = [32, 3], strides = [1, 1]} : vector<32x99xf32> to vector<32x3xf32>
    %7 = vector.extract_strided_slice %2 {offsets = [0, 0], sizes = [1, 32], strides = [1, 1]} : vector<8x128xf32> to vector<1x32xf32>
    %8 = vector.extract_strided_slice %2 {offsets = [1, 0], sizes = [1, 96], strides = [1, 1]} : vector<8x128xf32> to vector<1x96xf32>
    %9 = vector.extract_strided_slice %2 {offsets = [2, 0], sizes = [1, 32], strides = [1, 1]} : vector<8x128xf32> to vector<1x32xf32>
    %10 = vector.extract_strided_slice %2 {offsets = [3, 0], sizes = [1, 32], strides = [1, 1]} : vector<8x128xf32> to vector<1x32xf32>
    %11 = vector.extract_strided_slice %2 {offsets = [4, 0], sizes = [1, 32], strides = [1, 1]} : vector<8x128xf32> to vector<1x32xf32>
    %12 = vector.extract_strided_slice %2 {offsets = [5, 0], sizes = [1, 32], strides = [1, 1]} : vector<8x128xf32> to vector<1x32xf32>
    %13 = vector.extract_strided_slice %2 {offsets = [6, 0], sizes = [1, 3], strides = [1, 1]} : vector<8x128xf32> to vector<1x3xf32>
    %cst = arith.constant dense<0.000000e+00> : vector<16x32xf32>
    %14 = tpu.matmul %0, %3, %cst {dimension_numbers = #tpu.dot_dimension_numbers<[1], [0], [0], [1], [0, 0, 1, 1], [], []>} : vector<16x16xf32>, vector<16x32xf32>, vector<16x32xf32> -> vector<16x32xf32>
    %15 = vector.broadcast %7 : vector<1x32xf32> to vector<16x32xf32>
    %16 = arith.addf %14, %15 : vector<16x32xf32>
    %cst_5 = arith.constant 0.000000e+00 : f32
    %17 = vector.broadcast %cst_5 : f32 to vector<16x32xf32>
    %18 = arith.maximumf %16, %17 : vector<16x32xf32>
    %c0_6 = arith.constant 0 : index
    %c0_7 = arith.constant 0 : index
    %19 = vector.load %arg1[%c0_6, %c0_7] : memref<32x96xf32, #tpu.memory_space<vmem>>, vector<32x96xf32>
    %cst_8 = arith.constant dense<0.000000e+00> : vector<16x96xf32>
    %20 = tpu.matmul %18, %19, %cst_8 {dimension_numbers = #tpu.dot_dimension_numbers<[1], [0], [0], [1], [0, 0, 1, 1], [], []>} : vector<16x32xf32>, vector<32x96xf32>, vector<16x96xf32> -> vector<16x96xf32>
    %21 = vector.broadcast %8 : vector<1x96xf32> to vector<16x96xf32>
    %22 = arith.addf %20, %21 : vector<16x96xf32>
    %23 = tpu.iota {dimensions = array<i32: 0>} : vector<16x16xi32>
    %24 = tpu.iota {dimensions = array<i32: 1>} : vector<16x16xi32>
    %c2_i32 = arith.constant 2 : i32
    %c0_i32 = arith.constant 0 : i32
    %25 = arith.cmpi eq, %c2_i32, %c0_i32 : i32
    %c1_i32 = arith.constant 1 : i32
    %26 = arith.select %25, %c1_i32, %c2_i32 : i32
    %27 = vector.broadcast %26 : i32 to vector<16x16xi32>
    %28 = arith.remsi %23, %27 : vector<16x16xi32>
    %c0_i32_9 = arith.constant 0 : i32
    %29 = vector.broadcast %c0_i32_9 : i32 to vector<16x16xi32>
    %30 = arith.cmpi ne, %28, %29 : vector<16x16xi32>
    %c0_i32_10 = arith.constant 0 : i32
    %31 = vector.broadcast %c0_i32_10 : i32 to vector<16x16xi32>
    %32 = arith.cmpi slt, %28, %31 : vector<16x16xi32>
    %c0_i32_11 = arith.constant 0 : i32
    %33 = arith.cmpi slt, %26, %c0_i32_11 : i32
    %34 = vector.broadcast %33 : i1 to vector<16x16xi1>
    %35 = vector.broadcast %34 : vector<16x16xi1> to vector<16x16xi1>
    %36 = arith.xori %32, %35 : vector<16x16xi1>
    %37 = arith.andi %36, %30 : vector<16x16xi1>
    %38 = vector.broadcast %26 : i32 to vector<16x16xi32>
    %39 = arith.addi %28, %38 : vector<16x16xi32>
    %40 = arith.select %37, %39, %28 : vector<16x16xi1>, vector<16x16xi32>
    %c2_i32_12 = arith.constant 2 : i32
    %c0_i32_13 = arith.constant 0 : i32
    %41 = arith.cmpi eq, %c2_i32_12, %c0_i32_13 : i32
    %c1_i32_14 = arith.constant 1 : i32
    %42 = arith.select %41, %c1_i32_14, %c2_i32_12 : i32
    %43 = vector.broadcast %42 : i32 to vector<16x16xi32>
    %44 = arith.remsi %24, %43 : vector<16x16xi32>
    %c0_i32_15 = arith.constant 0 : i32
    %45 = vector.broadcast %c0_i32_15 : i32 to vector<16x16xi32>
    %46 = arith.cmpi ne, %44, %45 : vector<16x16xi32>
    %c0_i32_16 = arith.constant 0 : i32
    %47 = vector.broadcast %c0_i32_16 : i32 to vector<16x16xi32>
    %48 = arith.cmpi slt, %44, %47 : vector<16x16xi32>
    %c0_i32_17 = arith.constant 0 : i32
    %49 = arith.cmpi slt, %42, %c0_i32_17 : i32
    %50 = vector.broadcast %49 : i1 to vector<16x16xi1>
    %51 = vector.broadcast %50 : vector<16x16xi1> to vector<16x16xi1>
    %52 = arith.xori %48, %51 : vector<16x16xi1>
    %53 = arith.andi %52, %46 : vector<16x16xi1>
    %54 = vector.broadcast %42 : i32 to vector<16x16xi32>
    %55 = arith.addi %44, %54 : vector<16x16xi32>
    %56 = arith.select %53, %55, %44 : vector<16x16xi1>, vector<16x16xi32>
    %57 = arith.cmpi eq, %40, %56 : vector<16x16xi32>
    %cst_18 = arith.constant 0.000000e+00 : f32
    %58 = vector.broadcast %cst_18 : f32 to vector<16x32xf32>
    %59 = vector.extract_strided_slice %22 {offsets = [0, 0], sizes = [16, 16], strides = [1, 1]} : vector<16x96xf32> to vector<16x16xf32>
    %60 = vector.extract_strided_slice %22 {offsets = [0, 32], sizes = [16, 16], strides = [1, 1]} : vector<16x96xf32> to vector<16x16xf32>
    %61 = vector.extract_strided_slice %22 {offsets = [0, 64], sizes = [16, 16], strides = [1, 1]} : vector<16x96xf32> to vector<16x16xf32>
    %cst_19 = arith.constant dense<0.000000e+00> : vector<16x16xf32>
    %62 = tpu.matmul %59, %60, %cst_19 {dimension_numbers = #tpu.dot_dimension_numbers<[1], [1], [0], [0], [0, 0, 1, 0], [], []>} : vector<16x16xf32>, vector<16x16xf32>, vector<16x16xf32> -> vector<16x16xf32>
    %cst_20 = arith.constant -1.000000e+30 : f32
    %63 = vector.broadcast %cst_20 : f32 to vector<16x16xf32>
    %64 = arith.select %57, %62, %63 : vector<16x16xi1>, vector<16x16xf32>
    %cst_21 = arith.constant dense<0xFF800000> : vector<16xf32>
    %65 = vector.multi_reduction <maximumf>, %64, %cst_21 [1] : vector<16x16xf32> to vector<16xf32>
    %66 = vector.shape_cast %65 : vector<16xf32> to vector<16x1xf32>
    %67 = vector.broadcast %66 : vector<16x1xf32> to vector<16x16xf32>
    %68 = arith.subf %64, %67 : vector<16x16xf32>
    %69 = math.exp %68 : vector<16x16xf32>
    %cst_22 = arith.constant dense<0.000000e+00> : vector<16xf32>
    %70 = vector.multi_reduction <add>, %69, %cst_22 [1] : vector<16x16xf32> to vector<16xf32>
    %71 = vector.shape_cast %70 : vector<16xf32> to vector<16x1xf32>
    %72 = tpu.reciprocal %71 {approx = true} : vector<16x1xf32> -> vector<16x1xf32>
    %73 = vector.broadcast %72 : vector<16x1xf32> to vector<16x16xf32>
    %74 = arith.mulf %69, %73 : vector<16x16xf32>
    %cst_23 = arith.constant dense<0.000000e+00> : vector<16x16xf32>
    %75 = tpu.matmul %74, %61, %cst_23 {dimension_numbers = #tpu.dot_dimension_numbers<[1], [0], [0], [1], [0, 0, 1, 1], [], []>} : vector<16x16xf32>, vector<16x16xf32>, vector<16x16xf32> -> vector<16x16xf32>
    %76 = vector.extract_strided_slice %4 {offsets = [0, 0], sizes = [16, 32], strides = [1, 1]} : vector<32x32xf32> to vector<16x32xf32>
    %cst_24 = arith.constant dense<0.000000e+00> : vector<16x32xf32>
    %77 = tpu.matmul %75, %76, %cst_24 {dimension_numbers = #tpu.dot_dimension_numbers<[1], [0], [0], [1], [0, 0, 1, 1], [], []>} : vector<16x16xf32>, vector<16x32xf32>, vector<16x32xf32> -> vector<16x32xf32>
    %78 = arith.addf %58, %77 : vector<16x32xf32>
    %79 = vector.extract_strided_slice %22 {offsets = [0, 16], sizes = [16, 16], strides = [1, 1]} : vector<16x96xf32> to vector<16x16xf32>
    %80 = vector.extract_strided_slice %22 {offsets = [0, 48], sizes = [16, 16], strides = [1, 1]} : vector<16x96xf32> to vector<16x16xf32>
    %81 = vector.extract_strided_slice %22 {offsets = [0, 80], sizes = [16, 16], strides = [1, 1]} : vector<16x96xf32> to vector<16x16xf32>
    %cst_25 = arith.constant dense<0.000000e+00> : vector<16x16xf32>
    %82 = tpu.matmul %79, %80, %cst_25 {dimension_numbers = #tpu.dot_dimension_numbers<[1], [1], [0], [0], [0, 0, 1, 0], [], []>} : vector<16x16xf32>, vector<16x16xf32>, vector<16x16xf32> -> vector<16x16xf32>
    %cst_26 = arith.constant -1.000000e+30 : f32
    %83 = vector.broadcast %cst_26 : f32 to vector<16x16xf32>
    %84 = arith.select %57, %82, %83 : vector<16x16xi1>, vector<16x16xf32>
    %cst_27 = arith.constant dense<0xFF800000> : vector<16xf32>
    %85 = vector.multi_reduction <maximumf>, %84, %cst_27 [1] : vector<16x16xf32> to vector<16xf32>
    %86 = vector.shape_cast %85 : vector<16xf32> to vector<16x1xf32>
    %87 = vector.broadcast %86 : vector<16x1xf32> to vector<16x16xf32>
    %88 = arith.subf %84, %87 : vector<16x16xf32>
    %89 = math.exp %88 : vector<16x16xf32>
    %cst_28 = arith.constant dense<0.000000e+00> : vector<16xf32>
    %90 = vector.multi_reduction <add>, %89, %cst_28 [1] : vector<16x16xf32> to vector<16xf32>
    %91 = vector.shape_cast %90 : vector<16xf32> to vector<16x1xf32>
    %92 = tpu.reciprocal %91 {approx = true} : vector<16x1xf32> -> vector<16x1xf32>
    %93 = vector.broadcast %92 : vector<16x1xf32> to vector<16x16xf32>
    %94 = arith.mulf %89, %93 : vector<16x16xf32>
    %cst_29 = arith.constant dense<0.000000e+00> : vector<16x16xf32>
    %95 = tpu.matmul %94, %81, %cst_29 {dimension_numbers = #tpu.dot_dimension_numbers<[1], [0], [0], [1], [0, 0, 1, 1], [], []>} : vector<16x16xf32>, vector<16x16xf32>, vector<16x16xf32> -> vector<16x16xf32>
    %96 = vector.extract_strided_slice %4 {offsets = [16, 0], sizes = [16, 32], strides = [1, 1]} : vector<32x32xf32> to vector<16x32xf32>
    %cst_30 = arith.constant dense<0.000000e+00> : vector<16x32xf32>
    %97 = tpu.matmul %95, %96, %cst_30 {dimension_numbers = #tpu.dot_dimension_numbers<[1], [0], [0], [1], [0, 0, 1, 1], [], []>} : vector<16x16xf32>, vector<16x32xf32>, vector<16x32xf32> -> vector<16x32xf32>
    %98 = arith.addf %78, %97 : vector<16x32xf32>
    %99 = vector.broadcast %9 : vector<1x32xf32> to vector<16x32xf32>
    %100 = arith.addf %98, %99 : vector<16x32xf32>
    %101 = arith.addf %100, %18 : vector<16x32xf32>
    %cst_31 = arith.constant dense<0.000000e+00> : vector<16xf32>
    %102 = vector.multi_reduction <add>, %101, %cst_31 [1] : vector<16x32xf32> to vector<16xf32>
    %103 = vector.shape_cast %102 : vector<16xf32> to vector<16x1xf32>
    %cst_32 = arith.constant 3.200000e+01 : f32
    %104 = vector.broadcast %cst_32 : f32 to vector<16x1xf32>
    %105 = arith.divf %103, %104 : vector<16x1xf32>
    %106 = vector.broadcast %105 : vector<16x1xf32> to vector<16x32xf32>
    %107 = arith.subf %101, %106 : vector<16x32xf32>
    %108 = arith.mulf %107, %107 : vector<16x32xf32>
    %cst_33 = arith.constant dense<0.000000e+00> : vector<16xf32>
    %109 = vector.multi_reduction <add>, %108, %cst_33 [1] : vector<16x32xf32> to vector<16xf32>
    %110 = vector.shape_cast %109 : vector<16xf32> to vector<16x1xf32>
    %cst_34 = arith.constant 3.200000e+01 : f32
    %111 = vector.broadcast %cst_34 : f32 to vector<16x1xf32>
    %112 = arith.divf %110, %111 : vector<16x1xf32>
    %113 = vector.broadcast %105 : vector<16x1xf32> to vector<16x32xf32>
    %114 = arith.subf %101, %113 : vector<16x32xf32>
    %cst_35 = arith.constant 9.99999974E-6 : f32
    %115 = vector.broadcast %cst_35 : f32 to vector<16x1xf32>
    %116 = arith.addf %112, %115 : vector<16x1xf32>
    %117 = math.rsqrt %116 : vector<16x1xf32>
    %118 = vector.broadcast %117 : vector<16x1xf32> to vector<16x32xf32>
    %119 = arith.mulf %114, %118 : vector<16x32xf32>
    %120 = vector.broadcast %10 : vector<1x32xf32> to vector<16x32xf32>
    %121 = arith.mulf %119, %120 : vector<16x32xf32>
    %122 = vector.broadcast %11 : vector<1x32xf32> to vector<16x32xf32>
    %123 = arith.addf %121, %122 : vector<16x32xf32>
    %cst_36 = arith.constant 0.000000e+00 : f32
    %124 = vector.broadcast %cst_36 : f32 to vector<16x32xf32>
    %125 = arith.maximumf %123, %124 : vector<16x32xf32>
    %cst_37 = arith.constant dense<0.000000e+00> : vector<16x32xf32>
    %126 = tpu.matmul %125, %5, %cst_37 {dimension_numbers = #tpu.dot_dimension_numbers<[1], [0], [0], [1], [0, 0, 1, 1], [], []>} : vector<16x32xf32>, vector<32x32xf32>, vector<16x32xf32> -> vector<16x32xf32>
    %127 = vector.broadcast %12 : vector<1x32xf32> to vector<16x32xf32>
    %128 = arith.addf %126, %127 : vector<16x32xf32>
    %cst_38 = arith.constant 0.000000e+00 : f32
    %129 = vector.broadcast %cst_38 : f32 to vector<16x32xf32>
    %130 = arith.maximumf %128, %129 : vector<16x32xf32>
    %cst_39 = arith.constant dense<0.000000e+00> : vector<16x3xf32>
    %131 = tpu.matmul %130, %6, %cst_39 {dimension_numbers = #tpu.dot_dimension_numbers<[1], [0], [0], [1], [0, 0, 1, 1], [], []>} : vector<16x32xf32>, vector<32x3xf32>, vector<16x3xf32> -> vector<16x3xf32>
    %132 = vector.broadcast %13 : vector<1x3xf32> to vector<16x3xf32>
    %133 = arith.addf %131, %132 : vector<16x3xf32>
    %134 = arith.negf %133 : vector<16x3xf32>
    %135 = math.exp %134 : vector<16x3xf32>
    %cst_40 = arith.constant 1.000000e+00 : f32
    %136 = vector.broadcast %cst_40 : f32 to vector<16x3xf32>
    %137 = arith.addf %136, %135 : vector<16x3xf32>
    %138 = arith.divf %136, %137 : vector<16x3xf32>
    %c0_41 = arith.constant 0 : index
    %c0_42 = arith.constant 0 : index
    %139 = vector.load %arg4[%c0_41, %c0_42] : memref<16x3xf32, #tpu.memory_space<vmem>>, vector<16x3xf32>
    tpu.vector_store %arg4[%c0_41, %c0_42], %138 {strides = array<i32>} : memref<16x3xf32, #tpu.memory_space<vmem>>, vector<16x3xf32>,
    return
  }
}

</mosaic_0001>

<llo_original>
// kernel: endpoint_attention_forward.1
$region0: #{endpoint_attention_forward.1}
  #allocation0 [shape = 'u32[]', space=smem, size = 0x4, offset = 0x4, fixed_abs, tag = 'smem constant byte address 0x4 - core index']
  #allocation1 [shape = 'u32[72,128]{1,0:T(1,128)}', space=vmem, size = 0x9000, scoped, tag = 'internal scratch']
  %s0 = inlined_call_operand.hbm [shape: f32[16,16], index: 0, kind: input, shape index: {}]
  %s1 = inlined_call_operand.hbm [shape: f32[32,96], index: 1, kind: input, shape index: {}]
  %s2 = inlined_call_operand.hbm [shape: f32[32,99], index: 2, kind: input, shape index: {}]
  %s3 = inlined_call_operand.hbm [shape: f32[8,128], index: 3, kind: input, shape index: {}]
  %s4 = inlined_call_operand.vmem [shape: f32[16,3], index: 4, kind: output, shape index: {}]
  %s5 = sld [smem:[#allocation0]]
  $region42: #{endpoint_attention_forward.1} parent=0
    _
  %s7 = ssub.s32 1, %s5
  %s8 = scalar_select 0, %s7, %s5
  $region1: #{endpoint_attention_forward.1} parent=0
    #allocation2 [shape = 'u8[8192]{0}', space=vmem, size = 0x2000, scoped, tag = 'input window, operand 0, single buffered']
    #allocation3 [shape = 's32[1]{0}', space=sflag, size = 0x4, scoped, tag = 'scoped memory for endpoint_attention_forward.1']
    #allocation4 [shape = 'u8[16384]{0}', space=vmem, size = 0x4000, scoped, tag = 'input window, operand 1, single buffered']
    #allocation5 [shape = 's32[1]{0}', space=sflag, size = 0x4, scoped, tag = 'scoped memory for endpoint_attention_forward.1']
    #allocation6 [shape = 'u8[16384]{0}', space=vmem, size = 0x4000, scoped, tag = 'input window, operand 2, single buffered']
    #allocation7 [shape = 'u8[4096]{0}', space=vmem, size = 0x1000, scoped, tag = 'input window, operand 3, single buffered']
    #allocation8 [shape = 's32[1]{0}', space=sflag, size = 0x4, scoped, tag = 'scoped memory for endpoint_attention_forward.1']
    %9 = vsyncpa [#allocation3], 0
    %10 = vsyncpa [#allocation5], 0
    %11 = vsyncpa [#allocation8], 0
    // Predicated region
    $region2: #{endpoint_attention_forward.1} parent=1 // pred_check
      _
    $region3: #{endpoint_attention_forward.1} parent=1 // pred_check_branch
      %13 = sbr.rel (0) target = $region5
    $region4: #{endpoint_attention_forward.1} parent=1 // pred_region
      %15 = vsyncadd [#allocation3], 0
      %s16 = sshll.u32 %s0, 4
      %s17 = int_to_ptr.hbm [resolvable:$true] %s16
      %s18 = sshll.u32 [#allocation2], 4
      %s19 = int_to_ptr.vmem [resolvable:$true] %s18
      %24 = dma.hbm_to_vmem [thread:$0]  %s17, 256, %s19, [#allocation3], 128, 128, 8
    $region5: #{endpoint_attention_forward.1} parent=1 // pred_fallthru
      _
    // Predicated region
    $region6: #{endpoint_attention_forward.1} parent=1 // pred_check
      _
    $region7: #{endpoint_attention_forward.1} parent=1 // pred_check_branch
      %26 = sbr.rel (0) target = $region9
    $region8: #{endpoint_attention_forward.1} parent=1 // pred_region
      %28 = vsyncadd [#allocation5], 0
      %s29 = sshll.u32 %s1, 4
      %s30 = int_to_ptr.hbm [resolvable:$true] %s29
      %s31 = sshll.u32 [#allocation4], 4
      %s32 = int_to_ptr.vmem [resolvable:$true] %s31
      %37 = dma.hbm_to_vmem [thread:$0]  %s30, 512, %s32, [#allocation5], 128, 128, 8
    $region9: #{endpoint_attention_forward.1} parent=1 // pred_fallthru
      _
    // Predicated region
    $region10: #{endpoint_attention_forward.1} parent=1 // pred_check
      _
    $region11: #{endpoint_attention_forward.1} parent=1 // pred_check_branch
      %39 = sbr.rel (0) target = $region13
    $region12: #{endpoint_attention_forward.1} parent=1 // pred_region
      %41 = vsyncadd [#allocation5], 0
      %s42 = sshll.u32 %s2, 4
      %s43 = int_to_ptr.hbm [resolvable:$true] %s42
      %s44 = sshll.u32 [#allocation6], 4
      %s45 = int_to_ptr.vmem [resolvable:$true] %s44
      %50 = dma.hbm_to_vmem [thread:$0]  %s43, 512, %s45, [#allocation5], 128, 128, 8
    $region13: #{endpoint_attention_forward.1} parent=1 // pred_fallthru
      _
    // Predicated region
    $region14: #{endpoint_attention_forward.1} parent=1 // pred_check
      _
    $region15: #{endpoint_attention_forward.1} parent=1 // pred_check_branch
      %52 = sbr.rel (0) target = $region17
    $region16: #{endpoint_attention_forward.1} parent=1 // pred_region
      %54 = vsyncadd [#allocation8], 0
      %s56 = sshll.u32 %s3, 4
      %s57 = int_to_ptr.hbm [resolvable:$true] %s56
      %s58 = sshll.u32 [#allocation7], 4
      %s59 = int_to_ptr.vmem [resolvable:$true] %s58
      %61 = dma.hbm_to_vmem [thread:$0]  %s57, 128, %s59, [#allocation8]
    $region17: #{endpoint_attention_forward.1} parent=1 // pred_fallthru
      _
    // Predicated region
    $region18: #{endpoint_attention_forward.1} parent=1 // pred_check
      _
    $region19: #{endpoint_attention_forward.1} parent=1 // pred_check_branch
      %63 = sbr.rel (0) target = $region21
    $region20: #{endpoint_attention_forward.1} parent=1 // pred_region
      %65 = dma.done [#allocation3], 256
    $region21: #{endpoint_attention_forward.1} parent=1 // pred_fallthru
      _
    // Predicated region
    $region22: #{endpoint_attention_forward.1} parent=1 // pred_check
      _
    $region23: #{endpoint_attention_forward.1} parent=1 // pred_check_branch
      %67 = sbr.rel (0) target = $region25
    $region24: #{endpoint_attention_forward.1} parent=1 // pred_region
      %69 = dma.done [#allocation5], 512
    $region25: #{endpoint_attention_forward.1} parent=1 // pred_fallthru
      _
    // Predicated region
    $region26: #{endpoint_attention_forward.1} parent=1 // pred_check
      _
    $region27: #{endpoint_attention_forward.1} parent=1 // pred_check_branch
      %71 = sbr.rel (0) target = $region29
    $region28: #{endpoint_attention_forward.1} parent=1 // pred_region
      %73 = dma.done [#allocation5], 512
    $region29: #{endpoint_attention_forward.1} parent=1 // pred_fallthru
      _
    // Predicated region
    $region30: #{endpoint_attention_forward.1} parent=1 // pred_check
      _
    $region31: #{endpoint_attention_forward.1} parent=1 // pred_check_branch
      %75 = sbr.rel (0) target = $region33
    $region32: #{endpoint_attention_forward.1} parent=1 // pred_region
      %77 = dma.done [#allocation8], 128
    $region33: #{endpoint_attention_forward.1} parent=1 // pred_fallthru
      _
    %v78 = vld [vmem:[#allocation2] sm:$0xff]
    %v79 = vld [vmem:[#allocation2 + $0x8] sm:$0xff]
    %v80 = vld [vmem:[#allocation6] sm:$0xff]
    %v81 = vld [vmem:[#allocation6 + $0x8] sm:$0xff]
    %v82 = vld [vmem:[#allocation6 + $0x10] sm:$0xff]
    %v83 = vld [vmem:[#allocation6 + $0x18] sm:$0xff]
    %v84 = vld [vmem:[#allocation7] sm:$0xff]
    %v85 = vperm.slane %v84, 0
    %vm86 = vcmask 130048
    %v88 = vsel %vm86, %v78, 0
    %v91 = vsel %vm86, %v79, 0
    %93 = vmatpush.msra.mxu0 0.0
    %94 = vmatpush.msra.mxu0 0.0
    %95 = vmatpush.msra.mxu0 0.0
    %96 = vmatpush.msra.mxu0 0.0
    %97 = vmatpush.msra.mxu0 0.0
    %98 = vmatpush.msra.mxu0 0.0
    %99 = vmatpush.msra.mxu0 0.0
    %100 = vmatpush.msra.mxu0 0.0
    %101 = vmatpush.msra.mxu0 0.0
    %102 = vmatpush.msra.mxu0 0.0
    %103 = vmatpush.msra.mxu0 0.0
    %104 = vmatpush.msra.mxu0 0.0
    %105 = vmatpush.msra.mxu0 0.0
    %106 = vmatpush.msra.mxu0 0.0
    %107 = vmatpush.msra.mxu0 %v81
    %108 = vmatpush.msra.mxu0 %v80
    %109 = vmatmul.f32.gmra.mxu0 %v88
    %v110 = vpop.f32.mrf.mxu0
    %v111 = vadd.f32 %v85, %v110
    %112 = vmatmul.f32.gmra.mxu0 %v91
    %v113 = vpop.f32.mrf.mxu0
    %v114 = vadd.f32 %v85, %v113
    %115 = vdwg.mxu0
    %v116 = vmax.f32 %v111, 0.0
    %v117 = vmax.f32 %v114, 0.0
    %v118 = vld [vmem:[#allocation4] sm:$0xff]
    %v119 = vld [vmem:[#allocation4 + $0x8] sm:$0xff]
    %v120 = vld [vmem:[#allocation4 + $0x10] sm:$0xff]
    %v121 = vld [vmem:[#allocation4 + $0x18] sm:$0xff]
    %v122 = vperm.slane %v84, 1
    %vm123 = vcmask 261120
    %v125 = vsel %vm123, %v116, 0
    %v128 = vsel %vm123, %v117, 0
    %130 = vmatpush.msra.mxu0 0.0
    %131 = vmatpush.msra.mxu0 0.0
    %132 = vmatpush.msra.mxu0 0.0
    %133 = vmatpush.msra.mxu0 0.0
    %134 = vmatpush.msra.mxu0 0.0
    %135 = vmatpush.msra.mxu0 0.0
    %136 = vmatpush.msra.mxu0 0.0
    %137 = vmatpush.msra.mxu0 0.0
    %138 = vmatpush.msra.mxu0 0.0
    %139 = vmatpush.msra.mxu0 0.0
    %140 = vmatpush.msra.mxu0 0.0
    %141 = vmatpush.msra.mxu0 0.0
    %142 = vmatpush.msra.mxu0 %v121
    %143 = vmatpush.msra.mxu0 %v120
    %144 = vmatpush.msra.mxu0 %v119
    %145 = vmatpush.msra.mxu0 %v118
    %146 = vmatmul.f32.gmra.mxu0 %v125
    %v147 = vpop.f32.mrf.mxu0
    %v148 = vadd.f32 %v122, %v147
    %149 = vmatmul.f32.gmra.mxu0 %v128
    %v150 = vpop.f32.mrf.mxu0
    %v151 = vadd.f32 %v122, %v150
    %152 = vdwg.mxu0
    %v153 = vlaneseq
    %v154 = vshrl.u32 %v153, 7
    %v155 = vadd.s32 %v154, 8
    %v156 = vlaneseq
    %v157 = vand.u32 %v156, 127
    %vm158 = vcmp.lt.s32.totalorder %v154, 0
    %v159 = vsub.s32 0, %v154
    %v160 = vsel %vm158, %v159, %v154
    %v161 = vshrl.u32 %v160, 1
    %v162 = vand.u32 %v160, 1
    %v163 = vsub.s32 0, %v162
    %v164 = vsel %vm158, %v163, %v162
    %vm165 = vcmp.lt.s32.totalorder %v155, 0
    %v166 = vsub.s32 0, %v155
    %v167 = vsel %vm165, %v166, %v155
    %v168 = vshrl.u32 %v167, 1
    %v169 = vand.u32 %v167, 1
    %v170 = vsub.s32 0, %v169
    %v171 = vsel %vm165, %v170, %v169
    %vm172 = vcmp.ne.s32.totalorder %v164, 0
    %vm173 = vcmp.ne.s32.totalorder %v171, 0
    %vm174 = vcmp.lt.s32.totalorder %v164, 0
    %vm175 = vcmp.lt.s32.totalorder %v171, 0
    %vm176 = vmand %vm174, %vm172
    %vm177 = vmand %vm175, %vm173
    %v178 = vadd.s32 %v164, 2
    %v179 = vadd.s32 %v171, 2
    %v180 = vsel %vm176, %v178, %v164
    %v181 = vsel %vm177, %v179, %v171
    %vm182 = vcmp.lt.s32.totalorder %v157, 0
    %v183 = vsub.s32 0, %v157
    %v184 = vsel %vm182, %v183, %v157
    %v185 = vshrl.u32 %v184, 1
    %v186 = vand.u32 %v184, 1
    %v187 = vsub.s32 0, %v186
    %v188 = vsel %vm182, %v187, %v186
    %vm189 = vcmp.ne.s32.totalorder %v188, 0
    %vm190 = vcmp.lt.s32.totalorder %v188, 0
    %vm191 = vmand %vm190, %vm189
    %v192 = vadd.s32 %v188, 2
    %v193 = vsel %vm191, %v192, %v188
    %vm194 = vcmp.eq.s32.totalorder %v180, %v193
    %vm195 = vcmp.eq.s32.totalorder %v181, %v193
    %198 = vrot.lane.b32.xlu0 %v148, 96
    %v199 = vpop.permute.xlu0 %198
    %200 = vrot.lane.b32.xlu0 %v151, 96
    %v201 = vpop.permute.xlu0 %200
    %v202 = vsel %vm86, %v148, 0
    %v204 = vsel %vm86, %v151, 0
    %v206 = vsel %vm86, %v199, 0
    %v208 = vsel %vm86, %v201, 0
    %210 = vmatpush.xpose.msra.mxu0 0.0
    %211 = vmatpush.xpose.msra.mxu0 0.0
    %212 = vmatpush.xpose.msra.mxu0 0.0
    %213 = vmatpush.xpose.msra.mxu0 0.0
    %214 = vmatpush.xpose.msra.mxu0 0.0
    %215 = vmatpush.xpose.msra.mxu0 0.0
    %216 = vmatpush.xpose.msra.mxu0 0.0
    %217 = vmatpush.xpose.msra.mxu0 0.0
    %218 = vmatpush.xpose.msra.mxu0 0.0
    %219 = vmatpush.xpose.msra.mxu0 0.0
    %220 = vmatpush.xpose.msra.mxu0 0.0
    %221 = vmatpush.xpose.msra.mxu0 0.0
    %222 = vmatpush.xpose.msra.mxu0 0.0
    %223 = vmatpush.xpose.msra.mxu0 0.0
    %224 = vmatpush.xpose.msra.mxu0 %v208
    %225 = vmatpush.xpose.msra.mxu0 %v206
    %226 = vmatmul.f32.gmra.mxu0 %v202
    %v227 = vpop.f32.mrf.mxu0
    %v228 = vadd.f32 0.0, %v227
    %229 = vmatmul.f32.gmra.mxu0 %v204
    %v230 = vpop.f32.mrf.mxu0
    %v231 = vadd.f32 0.0, %v230
    %232 = vdwg.mxu0
    %v233 = vsel %vm194, %v228, -1e+30
    %v234 = vsel %vm195, %v231, -1e+30
    %v235 = vsel %vm86, %v233, -inf
    %236 = vmax.xlane.f32.xlu0 %v235
    %v237 = vpop.xlane.xlu0 %236
    %v238 = vsel %vm86, %v234, -inf
    %239 = vmax.xlane.f32.xlu0 %v238
    %v240 = vpop.xlane.xlu0 %239
    %v241 = vsub.f32 %v233, %v237
    %v242 = vsub.f32 %v234, %v240
    %v243 = vmul.f32 %v241, 1.442695
    %v244 = vpow.pop %v243
    %v245 = vmul.f32 %v242, 1.442695
    %v246 = vpow.pop %v245
    %v247 = vsel %vm86, %v244, 0.0
    %248 = vadd.xlane.f32.xlu0 %v247
    %v249 = vpop.xlane.xlu0 %248
    %v250 = vsel %vm86, %v246, 0.0
    %251 = vadd.xlane.f32.xlu0 %v250
    %v252 = vpop.xlane.xlu0 %251
    %v253 = vrcp.pop %v249
    %v254 = vrcp.pop %v252
    %v255 = vmul.f32 %v244, %v253
    %v256 = vmul.f32 %v246, %v254
    %257 = vrot.lane.b32.xlu0 %v148, 64
    %v258 = vpop.permute.xlu0 %257
    %259 = vrot.lane.b32.xlu0 %v151, 64
    %v260 = vpop.permute.xlu0 %259
    %v264 = vsel %vm86, %v255, 0
    %v267 = vsel %vm86, %v256, 0
    %269 = vmatpush.msra.mxu0 0.0
    %270 = vmatpush.msra.mxu0 0.0
    %271 = vmatpush.msra.mxu0 0.0
    %272 = vmatpush.msra.mxu0 0.0
    %273 = vmatpush.msra.mxu0 0.0
    %274 = vmatpush.msra.mxu0 0.0
    %275 = vmatpush.msra.mxu0 0.0
    %276 = vmatpush.msra.mxu0 0.0
    %277 = vmatpush.msra.mxu0 0.0
    %278 = vmatpush.msra.mxu0 0.0
    %279 = vmatpush.msra.mxu0 0.0
    %280 = vmatpush.msra.mxu0 0.0
    %281 = vmatpush.msra.mxu0 0.0
    %282 = vmatpush.msra.mxu0 0.0
    %283 = vmatpush.msra.mxu0 %v260
    %284 = vmatpush.msra.mxu0 %v258
    %285 = vmatmul.f32.gmra.mxu0 %v264
    %v286 = vpop.f32.mrf.mxu0
    %v287 = vadd.f32 0.0, %v286
    %288 = vmatmul.f32.gmra.mxu0 %v267
    %v289 = vpop.f32.mrf.mxu0
    %v290 = vadd.f32 0.0, %v289
    %291 = vdwg.mxu0
    %292 = vrot.lane.b32.xlu0 %v148, 112
    %v293 = vpop.permute.xlu0 %292
    %294 = vrot.lane.b32.xlu0 %v151, 112
    %v295 = vpop.permute.xlu0 %294
    %296 = vrot.lane.b32.xlu0 %v148, 80
    %v297 = vpop.permute.xlu0 %296
    %298 = vrot.lane.b32.xlu0 %v151, 80
    %v299 = vpop.permute.xlu0 %298
    %v300 = vsel %vm86, %v293, 0
    %v302 = vsel %vm86, %v295, 0
    %v304 = vsel %vm86, %v297, 0
    %v306 = vsel %vm86, %v299, 0
    %308 = vmatpush.xpose.msra.mxu0 0.0
    %309 = vmatpush.xpose.msra.mxu0 0.0
    %310 = vmatpush.xpose.msra.mxu0 0.0
    %311 = vmatpush.xpose.msra.mxu0 0.0
    %312 = vmatpush.xpose.msra.mxu0 0.0
    %313 = vmatpush.xpose.msra.mxu0 0.0
    %314 = vmatpush.xpose.msra.mxu0 0.0
    %315 = vmatpush.xpose.msra.mxu0 0.0
    %316 = vmatpush.xpose.msra.mxu0 0.0
    %317 = vmatpush.xpose.msra.mxu0 0.0
    %318 = vmatpush.xpose.msra.mxu0 0.0
    %319 = vmatpush.xpose.msra.mxu0 0.0
    %320 = vmatpush.xpose.msra.mxu0 0.0
    %321 = vmatpush.xpose.msra.mxu0 0.0
    %322 = vmatpush.xpose.msra.mxu0 %v306
    %323 = vmatpush.xpose.msra.mxu0 %v304
    %324 = vmatmul.f32.gmra.mxu0 %v300
    %v325 = vpop.f32.mrf.mxu0
    %v326 = vadd.f32 0.0, %v325
    %327 = vmatmul.f32.gmra.mxu0 %v302
    %v328 = vpop.f32.mrf.mxu0
    %v329 = vadd.f32 0.0, %v328
    %330 = vdwg.mxu0
    %v331 = vsel %vm194, %v326, -1e+30
    %v332 = vsel %vm195, %v329, -1e+30
    %v333 = vsel %vm86, %v331, -inf
    %334 = vmax.xlane.f32.xlu0 %v333
    %v335 = vpop.xlane.xlu0 %334
    %v336 = vsel %vm86, %v332, -inf
    %337 = vmax.xlane.f32.xlu0 %v336
    %v338 = vpop.xlane.xlu0 %337
    %v339 = vsub.f32 %v331, %v335
    %v340 = vsub.f32 %v332, %v338
    %v341 = vmul.f32 %v339, 1.442695
    %v342 = vpow.pop %v341
    %v343 = vmul.f32 %v340, 1.442695
    %v344 = vpow.pop %v343
    %v345 = vsel %vm86, %v342, 0.0
    %346 = vadd.xlane.f32.xlu0 %v345
    %v347 = vpop.xlane.xlu0 %346
    %v348 = vsel %vm86, %v344, 0.0
    %349 = vadd.xlane.f32.xlu0 %v348
    %v350 = vpop.xlane.xlu0 %349
    %v351 = vrcp.pop %v347
    %v352 = vrcp.pop %v350
    %v353 = vmul.f32 %v342, %v351
    %v354 = vmul.f32 %v344, %v352
    %355 = vrot.lane.b32.xlu0 %v148, 48
    %v356 = vpop.permute.xlu0 %355
    %357 = vrot.lane.b32.xlu0 %v151, 48
    %v358 = vpop.permute.xlu0 %357
    %v362 = vsel %vm86, %v353, 0
    %v365 = vsel %vm86, %v354, 0
    %367 = vmatpush.msra.mxu0 0.0
    %368 = vmatpush.msra.mxu0 0.0
    %369 = vmatpush.msra.mxu0 0.0
    %370 = vmatpush.msra.mxu0 0.0
    %371 = vmatpush.msra.mxu0 0.0
    %372 = vmatpush.msra.mxu0 0.0
    %373 = vmatpush.msra.mxu0 0.0
    %374 = vmatpush.msra.mxu0 0.0
    %375 = vmatpush.msra.mxu0 0.0
    %376 = vmatpush.msra.mxu0 0.0
    %377 = vmatpush.msra.mxu0 0.0
    %378 = vmatpush.msra.mxu0 0.0
    %379 = vmatpush.msra.mxu0 0.0
    %380 = vmatpush.msra.mxu0 0.0
    %381 = vmatpush.msra.mxu0 %v358
    %382 = vmatpush.msra.mxu0 %v356
    %383 = vmatmul.f32.gmra.mxu0 %v362
    %v384 = vpop.f32.mrf.mxu0
    %v385 = vadd.f32 0.0, %v384
    %386 = vmatmul.f32.gmra.mxu0 %v365
    %v387 = vpop.f32.mrf.mxu0
    %v388 = vadd.f32 0.0, %v387
    %389 = vdwg.mxu0
    %392 = vrot.lane.b32.xlu0 %v82, 96
    %v393 = vpop.permute.xlu0 %392
    %394 = vrot.lane.b32.xlu0 %v83, 96
    %v395 = vpop.permute.xlu0 %394
    %v399 = vsel %vm86, %v385, 0
    %v402 = vsel %vm86, %v388, 0
    %404 = vmatpush.msra.mxu0 0.0
    %405 = vmatpush.msra.mxu0 0.0
    %406 = vmatpush.msra.mxu0 0.0
    %407 = vmatpush.msra.mxu0 0.0
    %408 = vmatpush.msra.mxu0 0.0
    %409 = vmatpush.msra.mxu0 0.0
    %410 = vmatpush.msra.mxu0 0.0
    %411 = vmatpush.msra.mxu0 0.0
    %412 = vmatpush.msra.mxu0 0.0
    %413 = vmatpush.msra.mxu0 0.0
    %414 = vmatpush.msra.mxu0 0.0
    %415 = vmatpush.msra.mxu0 0.0
    %416 = vmatpush.msra.mxu0 0.0
    %417 = vmatpush.msra.mxu0 0.0
    %418 = vmatpush.msra.mxu0 %v395
    %419 = vmatpush.msra.mxu0 %v393
    %420 = vmatmul.f32.gmra.mxu0 %v399
    %v421 = vpop.f32.mrf.mxu0
    %v422 = vadd.f32 0.0, %v421
    %423 = vmatmul.f32.gmra.mxu0 %v402
    %v424 = vpop.f32.mrf.mxu0
    %v425 = vadd.f32 0.0, %v424
    %426 = vdwg.mxu0
    %429 = vrot.lane.b32.xlu0 %v80, 96
    %v430 = vpop.permute.xlu0 %429
    %431 = vrot.lane.b32.xlu0 %v81, 96
    %v432 = vpop.permute.xlu0 %431
    %v436 = vsel %vm86, %v287, 0
    %v439 = vsel %vm86, %v290, 0
    %441 = vmatpush.msra.mxu0 0.0
    %442 = vmatpush.msra.mxu0 0.0
    %443 = vmatpush.msra.mxu0 0.0
    %444 = vmatpush.msra.mxu0 0.0
    %445 = vmatpush.msra.mxu0 0.0
    %446 = vmatpush.msra.mxu0 0.0
    %447 = vmatpush.msra.mxu0 0.0
    %448 = vmatpush.msra.mxu0 0.0
    %449 = vmatpush.msra.mxu0 0.0
    %450 = vmatpush.msra.mxu0 0.0
    %451 = vmatpush.msra.mxu0 0.0
    %452 = vmatpush.msra.mxu0 0.0
    %453 = vmatpush.msra.mxu0 0.0
    %454 = vmatpush.msra.mxu0 0.0
    %455 = vmatpush.msra.mxu0 %v432
    %456 = vmatpush.msra.mxu0 %v430
    %457 = vmatmul.f32.gmra.mxu0 %v436
    %v458 = vpop.f32.mrf.mxu0
    %v459 = vadd.f32 %v422, %v458
    %460 = vmatmul.f32.gmra.mxu0 %v439
    %v461 = vpop.f32.mrf.mxu0
    %v462 = vadd.f32 %v425, %v461
    %463 = vdwg.mxu0
    %v464 = vperm.slane %v84, 2
    %v465 = vadd.f32 %v459, %v464
    %v466 = vadd.f32 %v462, %v464
    %v467 = vadd.f32 %v465, %v116
    %v468 = vadd.f32 %v466, %v117
    %v469 = vsel %vm123, %v467, 0.0
    %470 = vadd.xlane.f32.xlu0 %v469
    %v471 = vpop.xlane.xlu0 %470
    %v472 = vsel %vm123, %v468, 0.0
    %473 = vadd.xlane.f32.xlu0 %v472
    %v474 = vpop.xlane.xlu0 %473
    %v475 = vrcp.pop 32.0
    %v476 = vmul.f32 32.0, %v475
    %v477 = vsub.f32 1.0, %v476
    %v478 = vmul.f32 %v475, %v477
    %v479 = vadd.f32 %v475, %v478
    %vm480 = vweird.f32 %v475
    %v481 = vsel %vm480, %v475, %v479
    %v482 = vmul.f32 %v471, %v481
    %v483 = vmul.f32 %v474, %v481
    %v484 = vsub.f32 %v467, %v482
    %v485 = vsub.f32 %v468, %v483
    %v486 = vmul.f32 %v484, %v484
    %v487 = vmul.f32 %v485, %v485
    %v488 = vsel %vm123, %v486, 0.0
    %489 = vadd.xlane.f32.xlu0 %v488
    %v490 = vpop.xlane.xlu0 %489
    %v491 = vsel %vm123, %v487, 0.0
    %492 = vadd.xlane.f32.xlu0 %v491
    %v493 = vpop.xlane.xlu0 %492
    %v494 = vmul.f32 %v490, %v481
    %v495 = vmul.f32 %v493, %v481
    %v496 = vadd.f32 %v494, 1e-05
    %v497 = vadd.f32 %v495, 1e-05
    %v498 = vrsqrt.pop %v496
    %v499 = vmul.f32 %v498, %v496
    %v500 = vmul.f32 %v499, %v498
    %v501 = vmul.f32 0.5, %v500
    %v502 = vsub.f32 1.5, %v501
    %v503 = vmul.f32 %v498, %v502
    %vm504 = vweird.f32 %v496
    %vm505 = vweird.f32 %v498
    %vm506 = vmor %vm504, %vm505
    %v507 = vsel %vm506, %v498, %v503
    %v508 = vrsqrt.pop %v497
    %v509 = vmul.f32 %v508, %v497
    %v510 = vmul.f32 %v509, %v508
    %v511 = vmul.f32 0.5, %v510
    %v512 = vsub.f32 1.5, %v511
    %v513 = vmul.f32 %v508, %v512
    %vm514 = vweird.f32 %v497
    %vm515 = vweird.f32 %v508
    %vm516 = vmor %vm514, %vm515
    %v517 = vsel %vm516, %v508, %v513
    %v518 = vmul.f32 %v484, %v507
    %v519 = vmul.f32 %v485, %v517
    %v520 = vperm.slane %v84, 3
    %v521 = vmul.f32 %v518, %v520
    %v522 = vmul.f32 %v519, %v520
    %v523 = vperm.slane %v84, 4
    %v524 = vadd.f32 %v521, %v523
    %v525 = vadd.f32 %v522, %v523
    %v526 = vmax.f32 %v524, 0.0
    %v527 = vmax.f32 %v525, 0.0
    %v528 = vperm.slane %v84, 5
    %529 = vrot.lane.b32.xlu0 %v80, 64
    %v530 = vpop.permute.xlu0 %529
    %531 = vrot.lane.b32.xlu0 %v81, 64
    %v532 = vpop.permute.xlu0 %531
    %533 = vrot.lane.b32.xlu0 %v82, 64
    %v534 = vpop.permute.xlu0 %533
    %535 = vrot.lane.b32.xlu0 %v83, 64
    %v536 = vpop.permute.xlu0 %535
    %v542 = vsel %vm123, %v526, 0
    %v545 = vsel %vm123, %v527, 0
    %547 = vmatpush.msra.mxu0 0.0
    %548 = vmatpush.msra.mxu0 0.0
    %549 = vmatpush.msra.mxu0 0.0
    %550 = vmatpush.msra.mxu0 0.0
    %551 = vmatpush.msra.mxu0 0.0
    %552 = vmatpush.msra.mxu0 0.0
    %553 = vmatpush.msra.mxu0 0.0
    %554 = vmatpush.msra.mxu0 0.0
    %555 = vmatpush.msra.mxu0 0.0
    %556 = vmatpush.msra.mxu0 0.0
    %557 = vmatpush.msra.mxu0 0.0
    %558 = vmatpush.msra.mxu0 0.0
    %559 = vmatpush.msra.mxu0 %v536
    %560 = vmatpush.msra.mxu0 %v534
    %561 = vmatpush.msra.mxu0 %v532
    %562 = vmatpush.msra.mxu0 %v530
    %563 = vmatmul.f32.gmra.mxu0 %v542
    %v564 = vpop.f32.mrf.mxu0
    %v565 = vadd.f32 %v528, %v564
    %566 = vmatmul.f32.gmra.mxu0 %v545
    %v567 = vpop.f32.mrf.mxu0
    %v568 = vadd.f32 %v528, %v567
    %569 = vdwg.mxu0
    %v570 = vmax.f32 %v565, 0.0
    %v571 = vmax.f32 %v568, 0.0
    %v572 = vperm.slane %v84, 6
    %573 = vrot.lane.b32.xlu0 %v80, 32
    %v574 = vpop.permute.xlu0 %573
    %575 = vrot.lane.b32.xlu0 %v81, 32
    %v576 = vpop.permute.xlu0 %575
    %577 = vrot.lane.b32.xlu0 %v82, 32
    %v578 = vpop.permute.xlu0 %577
    %579 = vrot.lane.b32.xlu0 %v83, 32
    %v580 = vpop.permute.xlu0 %579
    %v586 = vsel %vm123, %v570, 0
    %v589 = vsel %vm123, %v571, 0
    %591 = vmatpush.msra.mxu0 0.0
    %592 = vmatpush.msra.mxu0 0.0
    %593 = vmatpush.msra.mxu0 0.0
    %594 = vmatpush.msra.mxu0 0.0
    %595 = vmatpush.msra.mxu0 0.0
    %596 = vmatpush.msra.mxu0 0.0
    %597 = vmatpush.msra.mxu0 0.0
    %598 = vmatpush.msra.mxu0 0.0
    %599 = vmatpush.msra.mxu0 0.0
    %600 = vmatpush.msra.mxu0 0.0
    %601 = vmatpush.msra.mxu0 0.0
    %602 = vmatpush.msra.mxu0 0.0
    %603 = vmatpush.msra.mxu0 %v580
    %604 = vmatpush.msra.mxu0 %v578
    %605 = vmatpush.msra.mxu0 %v576
    %606 = vmatpush.msra.mxu0 %v574
    %607 = vmatmul.f32.gmra.mxu0 %v586
    %v608 = vpop.f32.mrf.mxu0
    %v609 = vadd.f32 %v572, %v608
    %610 = vmatmul.f32.gmra.mxu0 %v589
    %v611 = vpop.f32.mrf.mxu0
    %v612 = vadd.f32 %v572, %v611
    %613 = vdwg.mxu0
    %v614 = vxor.u32 %v609, 2147483648
    %v615 = vxor.u32 %v612, 2147483648
    %v616 = vmul.f32 %v614, 1.442695
    %v617 = vpow.pop %v616
    %v618 = vmul.f32 %v615, 1.442695
    %v619 = vpow.pop %v618
    %v620 = vadd.f32 %v617, 1.0
    %v621 = vadd.f32 %v619, 1.0
    %v622 = vrcp.pop %v620
    %v623 = vmul.f32 %v620, %v622
    %v624 = vsub.f32 1.0, %v623
    %v625 = vmul.f32 %v622, %v624
    %v626 = vadd.f32 %v622, %v625
    %vm627 = vweird.f32 %v620
    %vm628 = vweird.f32 %v622
    %vm629 = vmor %vm627, %vm628
    %v630 = vsel %vm629, %v622, %v626
    %v631 = vand.u32 2147483647, %v620
    %vm632 = vcmp.eq.f32.partialorder %v631, 8.507059e+37
    %v633 = vand.u32 %v620, 2147483648
    %v634 = vor.u32 1.1754944e-38, %v633
    %v635 = vsel %vm632, %v634, %v630
    %v636 = vmul.f32 1.0, %v635
    %v637 = vrcp.pop %v621
    %v638 = vmul.f32 %v621, %v637
    %v639 = vsub.f32 1.0, %v638
    %v640 = vmul.f32 %v637, %v639
    %v641 = vadd.f32 %v637, %v640
    %vm642 = vweird.f32 %v621
    %vm643 = vweird.f32 %v637
    %vm644 = vmor %vm642, %vm643
    %v645 = vsel %vm644, %v637, %v641
    %v646 = vand.u32 2147483647, %v621
    %vm647 = vcmp.eq.f32.partialorder %v646, 8.507059e+37
    %v648 = vand.u32 %v621, 2147483648
    %v649 = vor.u32 1.1754944e-38, %v648
    %v650 = vsel %vm647, %v649, %v645
    %v651 = vmul.f32 1.0, %v650
    %vm652 = vcmask 23552
    %653 = vst.msk [vmem:[%s4] sm:$0xff] %vm652, %v636
    %654 = vst.msk [vmem:[%s4 + $0x8] sm:$0xff] %vm652, %v651
    // Predicated region
    $region34: #{endpoint_attention_forward.1} parent=1 // pred_check
      _
    $region35: #{endpoint_attention_forward.1} parent=1 // pred_check_branch
      %656 = sbr.rel (0) target = $region37
    $region36: #{endpoint_attention_forward.1} parent=1 // pred_region
      _
    $region37: #{endpoint_attention_forward.1} parent=1 // pred_fallthru
      _
    // Predicated region
    $region38: #{endpoint_attention_forward.1} parent=1 // pred_check
      _
    $region39: #{endpoint_attention_forward.1} parent=1 // pred_check_branch
      %658 = sbr.rel (0) target = $region41
    $region40: #{endpoint_attention_forward.1} parent=1 // pred_region
      _
    $region41: #{endpoint_attention_forward.1} parent=1 // pred_fallthru
      _
    %659 = vsyncpa [#allocation3], 1
    %660 = vsyncpa [#allocation5], 1
    %661 = vsyncpa [#allocation8], 1

</llo_original>
